<compile_context>
chip_gen: v6e
topology: v6e:2x2x1
jax: 0.10.0
libtpu: 0.0.40
codegen_flags: <defaults>
</compile_context>

<pallas_src>
import numpy as np
import jax
import jax.numpy as jnp
from jax.experimental import pallas as pl
from jax.experimental.pallas import tpu as pltpu


# ----------------------------- helper matrices ------------------------------

def _adaptive_pool_matrix(out_size, in_size):
    """Row-averaging matrix matching torch.nn.AdaptiveAvgPool (1-D factor)."""
    P = np.zeros((out_size, in_size), dtype=np.float32)
    for i in range(out_size):
        start = (i * in_size) // out_size
        end = -((-(i + 1) * in_size) // out_size)  # ceil((i+1)*in/out)
        P[i, start:end] = 1.0 / float(end - start)
    return P


def _bilinear_matrix(out_size, in_size):
    """1-D bilinear interpolation matrix, align_corners=True (PyTorch)."""
    U = np.zeros((out_size, in_size), dtype=np.float32)
    for y in range(out_size):
        if out_size > 1 and in_size > 1:
            sy = y * (in_size - 1) / (out_size - 1)
        else:
            sy = 0.0
        i0 = min(int(np.floor(sy)), in_size - 1)
        i1 = min(i0 + 1, in_size - 1)
        w1 = sy - i0
        U[y, i0] += 1.0 - w1
        U[y, i1] += w1
    return U


# --------------------------------- kernel -----------------------------------

def _psp_kernel(x_ref, w_ref, b_ref, m_ref, pt_ref, ut_ref, out_ref):
    # x_ref  : (Bt, C_in, HW)          f32   images; channels on sublanes, HW on lanes
    # w_ref  : (S*C_out, C_in)         bf16  stacked BN-folded 1x1 conv weights
    # b_ref  : (S*C_out, 1)            f32   folded BN bias
    # m_ref  : (S*C_out, S2)           f32   block-diagonal stage mask (0/1)
    # pt_ref : (HW, S2)                bf16  stacked adaptive-avg-pool operators (transposed)
    # ut_ref : (S2, HW)                bf16  stacked bilinear-upsample operators (transposed)
    # out_ref: (Bt, C_in+S*C_out, HW)  f32   [x passthrough ; per-stage results], lane-dense
    c_in = x_ref.shape[1]
    sc_out = w_ref.shape[0]

    # Hoist grid/loop-invariant loads out of the per-image loop.
    w = w_ref[...]
    bias = b_ref[...]
    mask = m_ref[...]
    pt = pt_ref[...]
    ut = ut_ref[...]

    def per_image(b, carry):
        x = x_ref[b]                                             # (C_in, HW) f32
        # Fused concat: identity prior goes straight into rows [0:C_in].
        out_ref[b, pl.ds(0, c_in), :] = x.astype(out_ref.dtype)
        xb = x.astype(jnp.bfloat16)                              # VPU cast, hidden under MXU slack
        pooled = jnp.dot(xb, pt,
                         preferred_element_type=jnp.float32)     # (C_in, S2)
        z = jnp.dot(w, pooled.astype(jnp.bfloat16),
                    preferred_element_type=jnp.float32)          # (S*C_out, S2)
        y = jnp.maximum(z + bias, 0.0) * mask                    # bias+ReLU+stage mask (f32 VPU)
        stage = jnp.dot(y.astype(jnp.bfloat16), ut,
                        preferred_element_type=jnp.float32)      # (S*C_out, HW)
        out_ref[b, pl.ds(c_in, sc_out), :] = stage.astype(out_ref.dtype)
        return carry

    jax.lax.fori_loop(0, x_ref.shape[0], per_image, None, unroll=True)


# ------------------------------- init / forward ------------------------------

def psp_init(conv_w, bn_gamma, bn_beta, bn_mean, bn_var, H, W,
             sizes=(1, 2, 3, 6), eps=1e-5):
    """Fold eval-mode BN into the 1x1 convs and precompute pooling / upsampling
    operators.  Call ONCE (constants depend only on static shapes + weights)."""
    S = len(sizes)
    C_out, C_in = conv_w.shape[1], conv_w.shape[2]
    HW = H * W
    s2 = [s * s for s in sizes]
    S2 = int(np.sum(s2))
    offs = np.concatenate([[0], np.cumsum(s2)]).astype(np.int64)

    # BN fold: gamma*(Wc x - mean)/sqrt(var+eps) + beta = (scale*Wc) x + (beta - mean*scale)
    scale = np.asarray(bn_gamma) / np.sqrt(np.asarray(bn_var) + eps)          # (S, C_out)
    W_all = (np.asarray(conv_w) * scale[:, :, None]).reshape(S * C_out, C_in)
    b_all = (np.asarray(bn_beta) - np.asarray(bn_mean) * scale).reshape(S * C_out, 1)

    PT = np.zeros((HW, S2), np.float32)        # x(C_in,HW) @ PT      -> pooled(C_in, S2)
    UT = np.zeros((S2, HW), np.float32)        # y(S*C_out,S2) @ UT   -> out(S*C_out, HW)
    mask = np.zeros((S * C_out, S2), np.float32)
    for si, s in enumerate(sizes):
        P2 = np.kron(_adaptive_pool_matrix(s, H), _adaptive_pool_matrix(s, W))  # (s*s, HW)
        U2 = np.kron(_bilinear_matrix(H, s), _bilinear_matrix(W, s))            # (HW, s*s)
        PT[:, offs[si]:offs[si + 1]] = P2.T
        UT[offs[si]:offs[si + 1], :] = U2.T
        mask[si * C_out:(si + 1) * C_out, offs[si]:offs[si + 1]] = 1.0

    return dict(
        W_all=jnp.asarray(W_all, jnp.bfloat16),
        b_all=jnp.asarray(b_all, jnp.float32),
        mask=jnp.asarray(mask, jnp.float32),
        PT=jnp.asarray(PT, jnp.bfloat16),
        UT=jnp.asarray(UT, jnp.bfloat16),
    )


def psp_forward(feats, consts):
    """feats: (B, C_in, H, W) f32.  Returns (B, C_in + S*C_out, H, W) f32."""
    B, C_in, H, W = feats.shape
    HW = H * W
    SC_out = consts['W_all'].shape[0]
    S2 = consts['PT'].shape[1]
    C_total = C_in + SC_out

    # Largest batch block <= 8 that divides B: one (or few) grid steps instead of B.
    Bt = next(bt for bt in range(min(B, 8), 0, -1) if B % bt == 0)

    # NCHW -> (B, C_in, HW): a pure reshape (no transpose), stays f32; the kernel does
    # the bf16 cast, so x crosses HBM exactly once at 4 B/elem and HW sits on lanes.
    x = feats.reshape(B, C_in, HW)

    const_bytes = sum(int(v.size) * v.dtype.itemsize
                      for v in (consts['W_all'], consts['b_all'], consts['mask'],
                                consts['PT'], consts['UT']))
    flops = 2 * B * (C_in * HW * S2 + SC_out * C_in * S2 + SC_out * S2 * HW)
    bytes_accessed = B * C_in * HW * 4 + B * C_total * HW * 4 + const_bytes

    # Real VMEM budget (double-buffered x/out blocks + constants) + headroom;
    # v5e's default scoped limit is only 16 MiB, so size it explicitly.
    x_blk = Bt * C_in * HW * 4
    o_blk = Bt * C_total * HW * 4
    vmem_limit = int(min(max(2 * (x_blk + o_blk) + 2 * const_bytes + (4 << 20), 8 << 20),
                         100 << 20))

    out = pl.pallas_call(
        _psp_kernel,
        out_shape=jax.ShapeDtypeStruct((B, C_total, HW), jnp.float32),
        grid_spec=pltpu.PrefetchScalarGridSpec(
            num_scalar_prefetch=0,
            grid=(B // Bt,),
            in_specs=[
                pl.BlockSpec((Bt, C_in, HW), lambda g: (g, 0, 0)),   # per-block images
                # Grid-invariant constants: block index never changes, fetched once.
                # TODO(synk): at production shapes mark these pipeline_mode=pl.Buffered(1)
                # to single-buffer them and free ~W_all-sized VMEM headroom.
                pl.BlockSpec((SC_out, C_in), lambda g: (0, 0)),
                pl.BlockSpec((SC_out, 1), lambda g: (0, 0)),
                pl.BlockSpec((SC_out, S2), lambda g: (0, 0)),
                pl.BlockSpec((HW, S2), lambda g: (0, 0)),
                pl.BlockSpec((S2, HW), lambda g: (0, 0)),
            ],
            out_specs=pl.BlockSpec((Bt, C_total, HW), lambda g: (g, 0, 0)),
        ),
        compiler_params=pltpu.CompilerParams(
            dimension_semantics=("parallel",),     # independent batch blocks
            vmem_limit_bytes=vmem_limit,
        ),
        cost_estimate=pl.CostEstimate(flops=flops, transcendentals=0,
                                      bytes_accessed=bytes_accessed),
    )(x, consts['W_all'], consts['b_all'], consts['mask'], consts['PT'], consts['UT'])

    # Already in final [x ; stage-major] channel layout: just reshape, no concat.
    return out.reshape(B, C_total, H, W)


# ----------------------------------- main ------------------------------------

if __name__ == "__main__":
    key = jax.random.PRNGKey(0)
    B, C_in, H, W = 2, 4, 16, 16
    C_out = 8
    sizes = (1, 2, 3, 6)
    S = len(sizes)

    k0, k1, k2, k3, k4, k5 = jax.random.split(key, 6)
    feats = jax.random.normal(k0, (B, C_in, H, W), jnp.float32)
    conv_w = 0.1 * jax.random.normal(k1, (S, C_out, C_in), jnp.float32)   # Conv2d(1x1, bias=False) per stage
    gamma = 1.0 + 0.1 * jax.random.normal(k2, (S, C_out), jnp.float32)    # BN weight
    beta = 0.1 * jax.random.normal(k3, (S, C_out), jnp.float32)           # BN bias
    rmean = 0.1 * jax.random.normal(k4, (S, C_out), jnp.float32)          # BN running_mean
    rvar = jnp.abs(1.0 + 0.1 * jax.random.normal(k5, (S, C_out), jnp.float32))  # BN running_var

    consts = psp_init(conv_w, gamma, beta, rmean, rvar, H, W, sizes)      # once, off the hot path
    fwd = jax.jit(psp_forward)
    out = jax.block_until_ready(fwd(feats, consts))
    assert out.shape == (B, C_in + S * C_out, H, W), out.shape

    # Correctness check (test-time only, not in the forward path): plain-JAX mirror
    # of the same bf16-operand math.
    x_f = feats.reshape(B, C_in, H * W).astype(jnp.bfloat16).astype(jnp.float32)
    pooled = jnp.einsum('bch,hp->bcp', x_f, consts['PT'].astype(jnp.float32))
    z = jnp.einsum('oc,bcp->bop', consts['W_all'].astype(jnp.float32),
                   pooled.astype(jnp.bfloat16).astype(jnp.float32))
    y = jnp.maximum(z + consts['b_all'][None], 0.0) * consts['mask'][None]
    ref_stage = jnp.einsum('bop,ph->boh',
                           y.astype(jnp.bfloat16).astype(jnp.float32),
                           consts['UT'].astype(jnp.float32))
    ref = jnp.concatenate([feats, ref_stage.reshape(B, S * C_out, H, W)], axis=1)
    np.testing.assert_allclose(np.asarray(out), np.asarray(ref), rtol=2e-2, atol=2e-2)

    print("KERNEL_OK")
</pallas_src>

<mosaic_0001>
module attributes {stable_mosaic.version = 11 : i64} {
  func.func @_psp_kernel(%arg0: i32, %arg1: memref<2x4x256xf32, #tpu.memory_space<vmem>>, %arg2: memref<32x4xbf16, #tpu.memory_space<vmem>>, %arg3: memref<32x1xf32, #tpu.memory_space<vmem>>, %arg4: memref<32x50xf32, #tpu.memory_space<vmem>>, %arg5: memref<256x50xbf16, #tpu.memory_space<vmem>>, %arg6: memref<50x256xbf16, #tpu.memory_space<vmem>>, %arg7: memref<2x36x256xf32, #tpu.memory_space<vmem>>) attributes {dimension_semantics = [#tpu.dimension_semantics<parallel>], iteration_bounds = array<i64: 1>, scalar_prefetch = 0 : i64, scratch_operands = 0 : i64, tpu.core_type = #tpu.core_type<tc>, window_params = [{transform_indices = @transform_0, window_bounds = array<i64: 2, 4, 256>}, {pipeline_mode = #tpu.pipeline_mode<synchronous>, transform_indices = @transform_1, window_bounds = array<i64: 32, 4>}, {pipeline_mode = #tpu.pipeline_mode<synchronous>, transform_indices = @transform_2, window_bounds = array<i64: 32, 1>}, {pipeline_mode = #tpu.pipeline_mode<synchronous>, transform_indices = @transform_3, window_bounds = array<i64: 32, 50>}, {pipeline_mode = #tpu.pipeline_mode<synchronous>, transform_indices = @transform_4, window_bounds = array<i64: 256, 50>}, {pipeline_mode = #tpu.pipeline_mode<synchronous>, transform_indices = @transform_5, window_bounds = array<i64: 50, 256>}, {transform_indices = @transform_6, window_bounds = array<i64: 2, 36, 256>}]} {
    %c0 = arith.constant 0 : index
    %c0_0 = arith.constant 0 : index
    %0 = vector.load %arg2[%c0, %c0_0] : memref<32x4xbf16, #tpu.memory_space<vmem>>, vector<32x4xbf16>
    %c0_1 = arith.constant 0 : index
    %c0_2 = arith.constant 0 : index
    %1 = vector.load %arg3[%c0_1, %c0_2] : memref<32x1xf32, #tpu.memory_space<vmem>>, vector<32x1xf32>
    %c0_3 = arith.constant 0 : index
    %c0_4 = arith.constant 0 : index
    %2 = vector.load %arg4[%c0_3, %c0_4] : memref<32x50xf32, #tpu.memory_space<vmem>>, vector<32x50xf32>
    %c0_5 = arith.constant 0 : index
    %c0_6 = arith.constant 0 : index
    %3 = vector.load %arg5[%c0_5, %c0_6] : memref<256x50xbf16, #tpu.memory_space<vmem>>, vector<256x50xbf16>
    %c0_7 = arith.constant 0 : index
    %c0_8 = arith.constant 0 : index
    %4 = vector.load %arg6[%c0_7, %c0_8] : memref<50x256xbf16, #tpu.memory_space<vmem>>, vector<50x256xbf16>
    %c0_i32 = arith.constant 0 : i32
    %5 = arith.index_cast %c0_i32 : i32 to index
    %c0_9 = arith.constant 0 : index
    %c0_10 = arith.constant 0 : index
    %6 = vector.load %arg1[%5, %c0_9, %c0_10] : memref<2x4x256xf32, #tpu.memory_space<vmem>>, vector<1x4x256xf32>
    %7 = vector.shape_cast %6 : vector<1x4x256xf32> to vector<4x256xf32>
    %8 = arith.index_cast %c0_i32 : i32 to index
    %c0_11 = arith.constant 0 : index
    %c0_12 = arith.constant 0 : index
    %9 = vector.load %arg7[%8, %c0_11, %c0_12] : memref<2x36x256xf32, #tpu.memory_space<vmem>>, vector<1x4x256xf32>
    %10 = vector.shape_cast %9 : vector<1x4x256xf32> to vector<4x256xf32>
    %11 = vector.shape_cast %7 : vector<4x256xf32> to vector<1x4x256xf32>
    tpu.vector_store %arg7[%8, %c0_11, %c0_12], %11 {strides = array<i32>} : memref<2x36x256xf32, #tpu.memory_space<vmem>>, vector<1x4x256xf32>,
    %12 = arith.truncf %7 : vector<4x256xf32> to vector<4x256xbf16>
    %cst = arith.constant dense<0.000000e+00> : vector<4x50xf32>
    %13 = tpu.matmul %12, %3, %cst {dimension_numbers = #tpu.dot_dimension_numbers<[1], [0], [0], [1], [0, 0, 1, 1], [], []>} : vector<4x256xbf16>, vector<256x50xbf16>, vector<4x50xf32> -> vector<4x50xf32>
    %14 = arith.truncf %13 : vector<4x50xf32> to vector<4x50xbf16>
    %cst_13 = arith.constant dense<0.000000e+00> : vector<32x50xf32>
    %15 = tpu.matmul %0, %14, %cst_13 {dimension_numbers = #tpu.dot_dimension_numbers<[1], [0], [0], [1], [0, 0, 1, 1], [], []>} : vector<32x4xbf16>, vector<4x50xbf16>, vector<32x50xf32> -> vector<32x50xf32>
    %16 = vector.broadcast %1 : vector<32x1xf32> to vector<32x50xf32>
    %17 = arith.addf %15, %16 : vector<32x50xf32>
    %cst_14 = arith.constant 0.000000e+00 : f32
    %18 = vector.broadcast %cst_14 : f32 to vector<32x50xf32>
    %19 = arith.maximumf %17, %18 : vector<32x50xf32>
    %20 = arith.mulf %19, %2 : vector<32x50xf32>
    %21 = arith.truncf %20 : vector<32x50xf32> to vector<32x50xbf16>
    %cst_15 = arith.constant dense<0.000000e+00> : vector<32x256xf32>
    %22 = tpu.matmul %21, %4, %cst_15 {dimension_numbers = #tpu.dot_dimension_numbers<[1], [0], [0], [1], [0, 0, 1, 1], [], []>} : vector<32x50xbf16>, vector<50x256xbf16>, vector<32x256xf32> -> vector<32x256xf32>
    %23 = arith.index_cast %c0_i32 : i32 to index
    %c4 = arith.constant 4 : index
    %c0_16 = arith.constant 0 : index
    %24 = vector.load %arg7[%23, %c4, %c0_16] : memref<2x36x256xf32, #tpu.memory_space<vmem>>, vector<1x32x256xf32>
    %25 = vector.shape_cast %24 : vector<1x32x256xf32> to vector<32x256xf32>
    %26 = vector.shape_cast %22 : vector<32x256xf32> to vector<1x32x256xf32>
    tpu.vector_store %arg7[%23, %c4, %c0_16], %26 {strides = array<i32>} : memref<2x36x256xf32, #tpu.memory_space<vmem>>, vector<1x32x256xf32>,
    %c1_i32 = arith.constant 1 : i32
    %27 = arith.index_cast %c1_i32 : i32 to index
    %c0_17 = arith.constant 0 : index
    %c0_18 = arith.constant 0 : index
    %28 = vector.load %arg1[%27, %c0_17, %c0_18] : memref<2x4x256xf32, #tpu.memory_space<vmem>>, vector<1x4x256xf32>
    %29 = vector.shape_cast %28 : vector<1x4x256xf32> to vector<4x256xf32>
    %30 = arith.index_cast %c1_i32 : i32 to index
    %c0_19 = arith.constant 0 : index
    %c0_20 = arith.constant 0 : index
    %31 = vector.load %arg7[%30, %c0_19, %c0_20] : memref<2x36x256xf32, #tpu.memory_space<vmem>>, vector<1x4x256xf32>
    %32 = vector.shape_cast %31 : vector<1x4x256xf32> to vector<4x256xf32>
    %33 = vector.shape_cast %29 : vector<4x256xf32> to vector<1x4x256xf32>
    tpu.vector_store %arg7[%30, %c0_19, %c0_20], %33 {strides = array<i32>} : memref<2x36x256xf32, #tpu.memory_space<vmem>>, vector<1x4x256xf32>,
    %34 = arith.truncf %29 : vector<4x256xf32> to vector<4x256xbf16>
    %cst_21 = arith.constant dense<0.000000e+00> : vector<4x50xf32>
    %35 = tpu.matmul %34, %3, %cst_21 {dimension_numbers = #tpu.dot_dimension_numbers<[1], [0], [0], [1], [0, 0, 1, 1], [], []>} : vector<4x256xbf16>, vector<256x50xbf16>, vector<4x50xf32> -> vector<4x50xf32>
    %36 = arith.truncf %35 : vector<4x50xf32> to vector<4x50xbf16>
    %cst_22 = arith.constant dense<0.000000e+00> : vector<32x50xf32>
    %37 = tpu.matmul %0, %36, %cst_22 {dimension_numbers = #tpu.dot_dimension_numbers<[1], [0], [0], [1], [0, 0, 1, 1], [], []>} : vector<32x4xbf16>, vector<4x50xbf16>, vector<32x50xf32> -> vector<32x50xf32>
    %38 = vector.broadcast %1 : vector<32x1xf32> to vector<32x50xf32>
    %39 = arith.addf %37, %38 : vector<32x50xf32>
    %cst_23 = arith.constant 0.000000e+00 : f32
    %40 = vector.broadcast %cst_23 : f32 to vector<32x50xf32>
    %41 = arith.maximumf %39, %40 : vector<32x50xf32>
    %42 = arith.mulf %41, %2 : vector<32x50xf32>
    %43 = arith.truncf %42 : vector<32x50xf32> to vector<32x50xbf16>
    %cst_24 = arith.constant dense<0.000000e+00> : vector<32x256xf32>
    %44 = tpu.matmul %43, %4, %cst_24 {dimension_numbers = #tpu.dot_dimension_numbers<[1], [0], [0], [1], [0, 0, 1, 1], [], []>} : vector<32x50xbf16>, vector<50x256xbf16>, vector<32x256xf32> -> vector<32x256xf32>
    %45 = arith.index_cast %c1_i32 : i32 to index
    %c4_25 = arith.constant 4 : index
    %c0_26 = arith.constant 0 : index
    %46 = vector.load %arg7[%45, %c4_25, %c0_26] : memref<2x36x256xf32, #tpu.memory_space<vmem>>, vector<1x32x256xf32>
    %47 = vector.shape_cast %46 : vector<1x32x256xf32> to vector<32x256xf32>
    %48 = vector.shape_cast %44 : vector<32x256xf32> to vector<1x32x256xf32>
    tpu.vector_store %arg7[%45, %c4_25, %c0_26], %48 {strides = array<i32>} : memref<2x36x256xf32, #tpu.memory_space<vmem>>, vector<1x32x256xf32>,
    %c2_i32 = arith.constant 2 : i32
    return
  }
  func.func @transform_0(%arg0: i32) -> (i32, i32, i32) {
    %c0_i32 = arith.constant 0 : i32
    %c0_i32_0 = arith.constant 0 : i32
    %c0_i32_1 = arith.constant 0 : i32
    return %arg0, %c0_i32, %c0_i32_0 : i32, i32, i32
  }
  func.func @transform_1(%arg0: i32) -> (i32, i32) {
    %c0_i32 = arith.constant 0 : i32
    %c0_i32_0 = arith.constant 0 : i32
    %c0_i32_1 = arith.constant 0 : i32
    return %c0_i32, %c0_i32_0 : i32, i32
  }
  func.func @transform_2(%arg0: i32) -> (i32, i32) {
    %c0_i32 = arith.constant 0 : i32
    %c0_i32_0 = arith.constant 0 : i32
    %c0_i32_1 = arith.constant 0 : i32
    return %c0_i32, %c0_i32_0 : i32, i32
  }
  func.func @transform_3(%arg0: i32) -> (i32, i32) {
    %c0_i32 = arith.constant 0 : i32
    %c0_i32_0 = arith.constant 0 : i32
    %c0_i32_1 = arith.constant 0 : i32
    return %c0_i32, %c0_i32_0 : i32, i32
  }
  func.func @transform_4(%arg0: i32) -> (i32, i32) {
    %c0_i32 = arith.constant 0 : i32
    %c0_i32_0 = arith.constant 0 : i32
    %c0_i32_1 = arith.constant 0 : i32
    return %c0_i32, %c0_i32_0 : i32, i32
  }
  func.func @transform_5(%arg0: i32) -> (i32, i32) {
    %c0_i32 = arith.constant 0 : i32
    %c0_i32_0 = arith.constant 0 : i32
    %c0_i32_1 = arith.constant 0 : i32
    return %c0_i32, %c0_i32_0 : i32, i32
  }
  func.func @transform_6(%arg0: i32) -> (i32, i32, i32) {
    %c0_i32 = arith.constant 0 : i32
    %c0_i32_0 = arith.constant 0 : i32
    %c0_i32_1 = arith.constant 0 : i32
    return %arg0, %c0_i32, %c0_i32_0 : i32, i32, i32
  }
}

</mosaic_0001>

<llo_original>
// kernel: psp_forward.1
$region0: #{psp_forward.1}
  #allocation0 [shape = 'u32[]', space=smem, size = 0x4, offset = 0x4, fixed_abs, tag = 'smem constant byte address 0x4 - core index']
  #allocation1 [shape = 'u32[144,128]{1,0:T(1,128)}', space=vmem, size = 0x12000, scoped, tag = 'internal scratch']
  %s0 = inlined_call_operand.vmem [shape: f32[2,4,256], index: 0, kind: input, shape index: {}]
  %s1 = inlined_call_operand.vmem [shape: bf16[32,4], index: 1, kind: input, shape index: {}]
  %s2 = inlined_call_operand.vmem [shape: f32[32,1], index: 2, kind: input, shape index: {}]
  %s3 = inlined_call_operand.vmem [shape: f32[32,50], index: 3, kind: input, shape index: {}]
  %s4 = inlined_call_operand.vmem [shape: bf16[256,50], index: 4, kind: input, shape index: {}]
  %s5 = inlined_call_operand.vmem [shape: bf16[50,256], index: 5, kind: input, shape index: {}]
  %s6 = inlined_call_operand.vmem [shape: f32[2,36,256], index: 6, kind: output, shape index: {}]
  %s7 = sld [smem:[#allocation0]]
  $region34: #{psp_forward.1} parent=0
    _
  %s9 = ssub.s32 1, %s7
  %s10 = scalar_select 0, %s9, %s7
  // Predicated region
  $region2: #{psp_forward.1} parent=0 // pred_check
    _
  $region3: #{psp_forward.1} parent=0 // pred_check_branch
    %12 = sbr.rel (0) target = $region5
  $region4: #{psp_forward.1} parent=0 // pred_region
    _
  $region5: #{psp_forward.1} parent=0 // pred_fallthru
    _
  // Predicated region
  $region6: #{psp_forward.1} parent=0 // pred_check
    _
  $region7: #{psp_forward.1} parent=0 // pred_check_branch
    %14 = sbr.rel (0) target = $region9
  $region8: #{psp_forward.1} parent=0 // pred_region
    _
  $region9: #{psp_forward.1} parent=0 // pred_fallthru
    _
  // Predicated region
  $region10: #{psp_forward.1} parent=0 // pred_check
    _
  $region11: #{psp_forward.1} parent=0 // pred_check_branch
    %16 = sbr.rel (0) target = $region13
  $region12: #{psp_forward.1} parent=0 // pred_region
    _
  $region13: #{psp_forward.1} parent=0 // pred_fallthru
    _
  // Predicated region
  $region14: #{psp_forward.1} parent=0 // pred_check
    _
  $region15: #{psp_forward.1} parent=0 // pred_check_branch
    %18 = sbr.rel (0) target = $region17
  $region16: #{psp_forward.1} parent=0 // pred_region
    _
  $region17: #{psp_forward.1} parent=0 // pred_fallthru
    _
  // Predicated region
  $region18: #{psp_forward.1} parent=0 // pred_check
    _
  $region19: #{psp_forward.1} parent=0 // pred_check_branch
    %20 = sbr.rel (0) target = $region21
  $region20: #{psp_forward.1} parent=0 // pred_region
    _
  $region21: #{psp_forward.1} parent=0 // pred_fallthru
    _
  // Predicated region
  $region22: #{psp_forward.1} parent=0 // pred_check
    _
  $region23: #{psp_forward.1} parent=0 // pred_check_branch
    %22 = sbr.rel (0) target = $region25
  $region24: #{psp_forward.1} parent=0 // pred_region
    _
  $region25: #{psp_forward.1} parent=0 // pred_fallthru
    _
  %v24 = vld [vmem:[%s1] sm:$0xf]
  %v25 = vld [vmem:[%s1 + $0x4] sm:$0xf]
  %v26 = vld [vmem:[%s1 + $0x8] sm:$0xf]
  %v27 = vld [vmem:[%s1 + $0xc] sm:$0xf]
  %v28 = vld [vmem:[%s2] sm:$0xff]
  %v29 = vld [vmem:[%s2 + $0x8] sm:$0xff]
  %v30 = vld [vmem:[%s2 + $0x10] sm:$0xff]
  %v31 = vld [vmem:[%s2 + $0x18] sm:$0xff]
  %v32 = vld [vmem:[%s3] sm:$0xff]
  %v33 = vld [vmem:[%s3 + $0x8] sm:$0xff]
  %v34 = vld [vmem:[%s3 + $0x10] sm:$0xff]
  %v35 = vld [vmem:[%s3 + $0x18] sm:$0xff]
  %v36 = vld [vmem:[%s4] sm:$0xf]
  %v37 = vld [vmem:[%s4 + $0x4] sm:$0xf]
  %v38 = vld [vmem:[%s4 + $0x8] sm:$0xf]
  %v39 = vld [vmem:[%s4 + $0xc] sm:$0xf]
  %v40 = vld [vmem:[%s4 + $0x10] sm:$0xf]
  %v41 = vld [vmem:[%s4 + $0x14] sm:$0xf]
  %v42 = vld [vmem:[%s4 + $0x18] sm:$0xf]
  %v43 = vld [vmem:[%s4 + $0x1c] sm:$0xf]
  %v44 = vld [vmem:[%s4 + $0x20] sm:$0xf]
  %v45 = vld [vmem:[%s4 + $0x24] sm:$0xf]
  %v46 = vld [vmem:[%s4 + $0x28] sm:$0xf]
  %v47 = vld [vmem:[%s4 + $0x2c] sm:$0xf]
  %v48 = vld [vmem:[%s4 + $0x30] sm:$0xf]
  %v49 = vld [vmem:[%s4 + $0x34] sm:$0xf]
  %v50 = vld [vmem:[%s4 + $0x38] sm:$0xf]
  %v51 = vld [vmem:[%s4 + $0x3c] sm:$0xf]
  %v52 = vld [vmem:[%s4 + $0x40] sm:$0xf]
  %v53 = vld [vmem:[%s4 + $0x44] sm:$0xf]
  %v54 = vld [vmem:[%s4 + $0x48] sm:$0xf]
  %v55 = vld [vmem:[%s4 + $0x4c] sm:$0xf]
  %v56 = vld [vmem:[%s4 + $0x50] sm:$0xf]
  %v57 = vld [vmem:[%s4 + $0x54] sm:$0xf]
  %v58 = vld [vmem:[%s4 + $0x58] sm:$0xf]
  %v59 = vld [vmem:[%s4 + $0x5c] sm:$0xf]
  %v60 = vld [vmem:[%s4 + $0x60] sm:$0xf]
  %v61 = vld [vmem:[%s4 + $0x64] sm:$0xf]
  %v62 = vld [vmem:[%s4 + $0x68] sm:$0xf]
  %v63 = vld [vmem:[%s4 + $0x6c] sm:$0xf]
  %v64 = vld [vmem:[%s4 + $0x70] sm:$0xf]
  %v65 = vld [vmem:[%s4 + $0x74] sm:$0xf]
  %v66 = vld [vmem:[%s4 + $0x78] sm:$0xf]
  %v67 = vld [vmem:[%s4 + $0x7c] sm:$0xf]
  %v68 = vld [vmem:[%s5] sm:$0xff]
  %v69 = vld [vmem:[%s5 + $0x8] sm:$0xff]
  %v70 = vld [vmem:[%s5 + $0x10] sm:$0xff]
  %v71 = vld [vmem:[%s5 + $0x18] sm:$0xff]
  %v72 = vld [vmem:[%s5 + $0x20] sm:$0xff]
  %v73 = vld [vmem:[%s5 + $0x28] sm:$0xff]
  %v74 = vld [vmem:[%s5 + $0x30] sm:$0x11]
  %v75 = vld [vmem:[%s0] sm:$0xff]
  %v77 = vcombine.high %v75, %v75
  %79 = vst [vmem:[%s6] sm:$0xf] %v75
  %80 = vst [vmem:[%s6 + $0x8] sm:$0xf] %v77
  %v81 = vpack.c.bf16 %v75, %v75
  %v82 = vpack.c.bf16 %v77, %v77
  %v115 = vunpack.c.l.b16 %v36
  %v116 = vunpack.c.l.b16 %v37
  %v117 = vunpack.c.l.b16 %v38
  %v118 = vunpack.c.l.b16 %v39
  %v119 = vunpack.c.l.b16 %v40
  %v120 = vunpack.c.l.b16 %v41
  %v121 = vunpack.c.l.b16 %v42
  %v122 = vunpack.c.l.b16 %v43
  %v123 = vunpack.c.l.b16 %v44
  %v124 = vunpack.c.l.b16 %v45
  %v125 = vunpack.c.l.b16 %v46
  %v126 = vunpack.c.l.b16 %v47
  %v127 = vunpack.c.l.b16 %v48
  %v128 = vunpack.c.l.b16 %v49
  %v129 = vunpack.c.l.b16 %v50
  %v130 = vunpack.c.l.b16 %v51
  %v131 = vunpack.c.l.b16 %v52
  %v132 = vunpack.c.l.b16 %v53
  %v133 = vunpack.c.l.b16 %v54
  %v134 = vunpack.c.l.b16 %v55
  %v135 = vunpack.c.l.b16 %v56
  %v136 = vunpack.c.l.b16 %v57
  %v137 = vunpack.c.l.b16 %v58
  %v138 = vunpack.c.l.b16 %v59
  %v139 = vunpack.c.l.b16 %v60
  %v140 = vunpack.c.l.b16 %v61
  %v141 = vunpack.c.l.b16 %v62
  %v142 = vunpack.c.l.b16 %v63
  %v143 = vunpack.c.l.b16 %v64
  %v144 = vunpack.c.l.b16 %v65
  %v145 = vunpack.c.l.b16 %v66
  %v146 = vunpack.c.l.b16 %v67
  %v147 = vpack.c.b16 %v116, %v115
  %v148 = vpack.c.b16 %v118, %v117
  %v149 = vpack.c.b16 %v120, %v119
  %v150 = vpack.c.b16 %v122, %v121
  %v151 = vpack.c.b16 %v124, %v123
  %v152 = vpack.c.b16 %v126, %v125
  %v153 = vpack.c.b16 %v128, %v127
  %v154 = vpack.c.b16 %v130, %v129
  %v155 = vpack.c.b16 %v132, %v131
  %v156 = vpack.c.b16 %v134, %v133
  %v157 = vpack.c.b16 %v136, %v135
  %v158 = vpack.c.b16 %v138, %v137
  %v159 = vpack.c.b16 %v140, %v139
  %v160 = vpack.c.b16 %v142, %v141
  %v161 = vpack.c.b16 %v144, %v143
  %v162 = vpack.c.b16 %v146, %v145
  %179 = vmatprep.subr.bf16.mxu0 0
  %180 = vmatpush1.bf16.msra.mxu0 %v154
  %181 = vmatprep.subr.bf16.mxu0 0
  %182 = vmatpush1.bf16.msra.mxu0 %v153
  %183 = vmatprep.subr.bf16.mxu0 0
  %184 = vmatpush1.bf16.msra.mxu0 %v152
  %185 = vmatprep.subr.bf16.mxu0 0
  %186 = vmatpush1.bf16.msra.mxu0 %v151
  %187 = vmatprep.subr.bf16.mxu0 0
  %188 = vmatpush1.bf16.msra.mxu0 %v150
  %189 = vmatprep.subr.bf16.mxu0 0
  %190 = vmatpush1.bf16.msra.mxu0 %v149
  %191 = vmatprep.subr.bf16.mxu0 0
  %192 = vmatpush1.bf16.msra.mxu0 %v148
  %193 = vmatprep.subr.bf16.mxu0 0
  %194 = vmatpush1.bf16.msra.mxu0 %v147
  %195 = vmatprep.subr.bf16.mxu0 0
  %196 = vmatpush2.bf16.msra.mxu0 %v162
  %197 = vmatprep.subr.bf16.mxu0 0
  %198 = vmatpush2.bf16.msra.mxu0 %v161
  %199 = vmatprep.subr.bf16.mxu0 0
  %200 = vmatpush2.bf16.msra.mxu0 %v160
  %201 = vmatprep.subr.bf16.mxu0 0
  %202 = vmatpush2.bf16.msra.mxu0 %v159
  %203 = vmatprep.subr.bf16.mxu0 0
  %204 = vmatpush2.bf16.msra.mxu0 %v158
  %205 = vmatprep.subr.bf16.mxu0 0
  %206 = vmatpush2.bf16.msra.mxu0 %v157
  %207 = vmatprep.subr.bf16.mxu0 0
  %208 = vmatpush2.bf16.msra.mxu0 %v156
  %209 = vmatprep.subr.bf16.mxu0 0
  %210 = vmatpush2.bf16.msra.mxu0 %v155
  %211 = vmatprep.mubr.bf16.mxu0 %v82
  %212 = vmatmul.mubr.bf16.gmra.mxu0 %v81
  %v213 = vpop.f32.mrf.mxu0
  %v214 = vadd.f32 0.0, %v213
  %v215 = vpop.f32.mrf.mxu0
  %v216 = vpop.f32.mrf.mxu0
  %v217 = vpop.f32.mrf.mxu0
  %218 = vdwg.mxu0
  %v219 = vpack.c.bf16 %v214, %v214
  %221 = vset.pattern.permute.xlu0 0
  %222 = vperm.xlu0 %221, %v28
  %v223 = vpop.permute.xlu0 %222
  %226 = vset.pattern.permute.xlu0 0
  %227 = vperm.xlu0 %226, %v29
  %v228 = vpop.permute.xlu0 %227
  %231 = vset.pattern.permute.xlu0 0
  %232 = vperm.xlu0 %231, %v30
  %v233 = vpop.permute.xlu0 %232
  %236 = vset.pattern.permute.xlu0 0
  %237 = vperm.xlu0 %236, %v31
  %v238 = vpop.permute.xlu0 %237
  %v244 = vunpack.c.l.b16 %v24
  %v245 = vunpack.c.l.b16 %v25
  %v246 = vunpack.c.l.b16 %v26
  %v247 = vunpack.c.l.b16 %v27
  %v248 = vpack.c.b16 %v245, %v244
  %v249 = vpack.c.b16 %v247, %v246
  %vm250 = vcmask 31744
  %v252 = vsel %vm250, %v248, 0
  %v255 = vsel %vm250, %v249, 0
  %vm257 = vcmask 1041408
  %v259 = vsel %vm257, %v219, 0
  %261 = vmatprep.subr.bf16.mxu0 0
  %262 = vmatpush1.bf16.msra.mxu0 0
  %263 = vmatprep.subr.bf16.mxu0 0
  %264 = vmatpush1.bf16.msra.mxu0 0
  %265 = vmatprep.subr.bf16.mxu0 0
  %266 = vmatpush1.bf16.msra.mxu0 0
  %267 = vmatprep.subr.bf16.mxu0 0
  %268 = vmatpush1.bf16.msra.mxu0 0
  %269 = vmatprep.subr.bf16.mxu0 0
  %270 = vmatpush1.bf16.msra.mxu0 0
  %271 = vmatprep.subr.bf16.mxu0 0
  %272 = vmatpush1.bf16.msra.mxu0 0
  %273 = vmatprep.subr.bf16.mxu0 0
  %274 = vmatpush1.bf16.msra.mxu0 0
  %275 = vmatprep.subr.bf16.mxu0 0
  %276 = vmatpush1.bf16.msra.mxu0 %v259
  %277 = vmatprep.subr.bf16.mxu0 0
  %278 = vmatpush2.bf16.msra.mxu0 0
  %279 = vmatprep.subr.bf16.mxu0 0
  %280 = vmatpush2.bf16.msra.mxu0 0
  %281 = vmatprep.subr.bf16.mxu0 0
  %282 = vmatpush2.bf16.msra.mxu0 0
  %283 = vmatprep.subr.bf16.mxu0 0
  %284 = vmatpush2.bf16.msra.mxu0 0
  %285 = vmatprep.subr.bf16.mxu0 0
  %286 = vmatpush2.bf16.msra.mxu0 0
  %287 = vmatprep.subr.bf16.mxu0 0
  %288 = vmatpush2.bf16.msra.mxu0 0
  %289 = vmatprep.subr.bf16.mxu0 0
  %290 = vmatpush2.bf16.msra.mxu0 0
  %291 = vmatprep.subr.bf16.mxu0 0
  %292 = vmatpush2.bf16.msra.mxu0 0
  %293 = vmatprep.mubr.bf16.mxu0 0
  %294 = vmatmul.mubr.bf16.gmra.mxu0 %v252
  %v295 = vpop.f32.mrf.mxu0
  %v296 = vadd.f32 %v223, %v295
  %v297 = vpop.f32.mrf.mxu0
  %v298 = vpop.f32.mrf.mxu0
  %v299 = vadd.f32 %v228, %v298
  %v300 = vpop.f32.mrf.mxu0
  %301 = vmatprep.mubr.bf16.mxu0 0
  %302 = vmatmul.mubr.bf16.gmra.mxu0 %v255
  %v303 = vpop.f32.mrf.mxu0
  %v304 = vadd.f32 %v233, %v303
  %v305 = vpop.f32.mrf.mxu0
  %v306 = vpop.f32.mrf.mxu0
  %v307 = vadd.f32 %v238, %v306
  %v308 = vpop.f32.mrf.mxu0
  %309 = vdwg.mxu0
  %v310 = vmax.f32 %v296, 0.0
  %v311 = vmax.f32 %v299, 0.0
  %v312 = vmax.f32 %v304, 0.0
  %v313 = vmax.f32 %v307, 0.0
  %v314 = vmul.f32 %v310, %v32
  %v315 = vmul.f32 %v311, %v33
  %v316 = vmul.f32 %v312, %v34
  %v317 = vmul.f32 %v313, %v35
  %v318 = vpack.c.bf16 %v315, %v314
  %v319 = vpack.c.bf16 %v317, %v316
  %v327 = vunpack.c.l.b16 %v68
  %v328 = vunpack.c.h.b16 %v68
  %v329 = vunpack.c.l.b16 %v69
  %v330 = vunpack.c.h.b16 %v69
  %v331 = vunpack.c.l.b16 %v70
  %v332 = vunpack.c.h.b16 %v70
  %v333 = vunpack.c.l.b16 %v71
  %v334 = vunpack.c.h.b16 %v71
  %v335 = vunpack.c.l.b16 %v72
  %v336 = vunpack.c.h.b16 %v72
  %v337 = vunpack.c.l.b16 %v73
  %v338 = vunpack.c.h.b16 %v73
  %v339 = vunpack.c.l.b16 %v74
  %v340 = vunpack.c.h.b16 %v74
  %v341 = vpack.c.b16 %v329, %v327
  %v342 = vpack.c.b16 %v330, %v328
  %v343 = vpack.c.b16 %v333, %v331
  %v344 = vpack.c.b16 %v334, %v332
  %v345 = vpack.c.b16 %v337, %v335
  %v346 = vpack.c.b16 %v338, %v336
  %v347 = vpack.c.b16 %v339, %v339
  %v348 = vpack.c.b16 %v340, %v340
  %vm355 = vcmask 408576
  %v357 = vsel %vm355, %v318, 0
  %v360 = vsel %vm355, %v319, 0
  %vm362 = vcmask 1040384
  %v364 = vsel %vm362, %v347, 0
  %v367 = vsel %vm362, %v348, 0
  %369 = vmatprep.subr.bf16.mxu0 0
  %370 = vmatpush1.bf16.msra.mxu0 0
  %371 = vmatprep.subr.bf16.mxu0 0
  %372 = vmatpush1.bf16.msra.mxu0 0
  %373 = vmatprep.subr.bf16.mxu0 0
  %374 = vmatpush1.bf16.msra.mxu0 0
  %375 = vmatprep.subr.bf16.mxu0 0
  %376 = vmatpush1.bf16.msra.mxu0 0
  %377 = vmatprep.subr.bf16.mxu0 %v367
  %378 = vmatpush1.bf16.msra.mxu0 %v364
  %379 = vmatprep.subr.bf16.mxu0 %v346
  %380 = vmatpush1.bf16.msra.mxu0 %v345
  %381 = vmatprep.subr.bf16.mxu0 %v344
  %382 = vmatpush1.bf16.msra.mxu0 %v343
  %383 = vmatprep.subr.bf16.mxu0 %v342
  %384 = vmatpush1.bf16.msra.mxu0 %v341
  %385 = vmatprep.subr.bf16.mxu0 0
  %386 = vmatpush2.bf16.msra.mxu0 0
  %387 = vmatprep.subr.bf16.mxu0 0
  %388 = vmatpush2.bf16.msra.mxu0 0
  %389 = vmatprep.subr.bf16.mxu0 0
  %390 = vmatpush2.bf16.msra.mxu0 0
  %391 = vmatprep.subr.bf16.mxu0 0
  %392 = vmatpush2.bf16.msra.mxu0 0
  %393 = vmatprep.subr.bf16.mxu0 0
  %394 = vmatpush2.bf16.msra.mxu0 0
  %395 = vmatprep.subr.bf16.mxu0 0
  %396 = vmatpush2.bf16.msra.mxu0 0
  %397 = vmatprep.subr.bf16.mxu0 0
  %398 = vmatpush2.bf16.msra.mxu0 0
  %399 = vmatprep.subr.bf16.mxu0 0
  %400 = vmatpush2.bf16.msra.mxu0 0
  %401 = vmatprep.mubr.bf16.mxu0 0
  %402 = vmatmul.mubr.bf16.gmra.mxu0 %v357
  %v403 = vpop.f32.mrf.mxu0
  %v404 = vadd.f32 0.0, %v403
  %v405 = vpop.f32.mrf.mxu0
  %v406 = vadd.f32 0.0, %v405
  %v407 = vpop.f32.mrf.mxu0
  %v408 = vadd.f32 0.0, %v407
  %v409 = vpop.f32.mrf.mxu0
  %v410 = vadd.f32 0.0, %v409
  %411 = vmatprep.mubr.bf16.mxu0 0
  %412 = vmatmul.mubr.bf16.gmra.mxu0 %v360
  %v413 = vpop.f32.mrf.mxu0
  %v414 = vadd.f32 0.0, %v413
  %v415 = vpop.f32.mrf.mxu0
  %v416 = vadd.f32 0.0, %v415
  %v417 = vpop.f32.mrf.mxu0
  %v418 = vadd.f32 0.0, %v417
  %v419 = vpop.f32.mrf.mxu0
  %v420 = vadd.f32 0.0, %v419
  %421 = vdwg.mxu0
  %vm430 = vcmask 1043456
  %v431 = vrot.slane %v404, 4
  %v432 = vrot.slane %v406, 4
  %v433 = vrot.slane %v408, 4
  %v434 = vsel %vm430, %v431, %v433
  %v435 = vrot.slane %v410, 4
  %v436 = vsel %vm430, %v432, %v435
  %v437 = vrot.slane %v414, 4
  %v438 = vsel %vm430, %v433, %v437
  %v439 = vrot.slane %v416, 4
  %v440 = vsel %vm430, %v435, %v439
  %v441 = vrot.slane %v418, 4
  %v442 = vsel %vm430, %v437, %v441
  %v443 = vrot.slane %v420, 4
  %v444 = vsel %vm430, %v439, %v443
  %455 = vst [vmem:[%s6] sm:$0xf0] %v431
  %456 = vst [vmem:[%s6 + $0x8] sm:$0xf0] %v432
  %457 = vst [vmem:[%s6 + $0x10] sm:$0xff] %v434
  %458 = vst [vmem:[%s6 + $0x18] sm:$0xff] %v436
  %459 = vst [vmem:[%s6 + $0x20] sm:$0xff] %v438
  %460 = vst [vmem:[%s6 + $0x28] sm:$0xff] %v440
  %461 = vst [vmem:[%s6 + $0x30] sm:$0xff] %v442
  %462 = vst [vmem:[%s6 + $0x38] sm:$0xff] %v444
  %463 = vst [vmem:[%s6 + $0x40] sm:$0xf] %v441
  %464 = vst [vmem:[%s6 + $0x48] sm:$0xf] %v443
  %s465 = scalar_lea.vmem %s0, 8
  %v466 = vld [vmem:[%s465] sm:$0xff]
  %v468 = vcombine.high %v466, %v466
  %s470 = scalar_lea.vmem %s6, 80
  %471 = vst [vmem:[%s470] sm:$0xf] %v466
  %472 = vst [vmem:[%s470 + $0x8] sm:$0xf] %v468
  %v473 = vpack.c.bf16 %v466, %v466
  %v474 = vpack.c.bf16 %v468, %v468
  %475 = vmatprep.subr.bf16.mxu0 0
  %476 = vmatpush1.bf16.msra.mxu0 %v154
  %477 = vmatprep.subr.bf16.mxu0 0
  %478 = vmatpush1.bf16.msra.mxu0 %v153
  %479 = vmatprep.subr.bf16.mxu0 0
  %480 = vmatpush1.bf16.msra.mxu0 %v152
  %481 = vmatprep.subr.bf16.mxu0 0
  %482 = vmatpush1.bf16.msra.mxu0 %v151
  %483 = vmatprep.subr.bf16.mxu0 0
  %484 = vmatpush1.bf16.msra.mxu0 %v150
  %485 = vmatprep.subr.bf16.mxu0 0
  %486 = vmatpush1.bf16.msra.mxu0 %v149
  %487 = vmatprep.subr.bf16.mxu0 0
  %488 = vmatpush1.bf16.msra.mxu0 %v148
  %489 = vmatprep.subr.bf16.mxu0 0
  %490 = vmatpush1.bf16.msra.mxu0 %v147
  %491 = vmatprep.subr.bf16.mxu0 0
  %492 = vmatpush2.bf16.msra.mxu0 %v162
  %493 = vmatprep.subr.bf16.mxu0 0
  %494 = vmatpush2.bf16.msra.mxu0 %v161
  %495 = vmatprep.subr.bf16.mxu0 0
  %496 = vmatpush2.bf16.msra.mxu0 %v160
  %497 = vmatprep.subr.bf16.mxu0 0
  %498 = vmatpush2.bf16.msra.mxu0 %v159
  %499 = vmatprep.subr.bf16.mxu0 0
  %500 = vmatpush2.bf16.msra.mxu0 %v158
  %501 = vmatprep.subr.bf16.mxu0 0
  %502 = vmatpush2.bf16.msra.mxu0 %v157
  %503 = vmatprep.subr.bf16.mxu0 0
  %504 = vmatpush2.bf16.msra.mxu0 %v156
  %505 = vmatprep.subr.bf16.mxu0 0
  %506 = vmatpush2.bf16.msra.mxu0 %v155
  %507 = vmatprep.mubr.bf16.mxu0 %v474
  %508 = vmatmul.mubr.bf16.gmra.mxu0 %v473
  %v509 = vpop.f32.mrf.mxu0
  %v510 = vadd.f32 0.0, %v509
  %v511 = vpop.f32.mrf.mxu0
  %v512 = vpop.f32.mrf.mxu0
  %v513 = vpop.f32.mrf.mxu0
  %514 = vdwg.mxu0
  %v515 = vpack.c.bf16 %v510, %v510
  %v517 = vsel %vm257, %v515, 0
  %519 = vmatprep.subr.bf16.mxu0 0
  %520 = vmatpush1.bf16.msra.mxu0 0
  %521 = vmatprep.subr.bf16.mxu0 0
  %522 = vmatpush1.bf16.msra.mxu0 0
  %523 = vmatprep.subr.bf16.mxu0 0
  %524 = vmatpush1.bf16.msra.mxu0 0
  %525 = vmatprep.subr.bf16.mxu0 0
  %526 = vmatpush1.bf16.msra.mxu0 0
  %527 = vmatprep.subr.bf16.mxu0 0
  %528 = vmatpush1.bf16.msra.mxu0 0
  %529 = vmatprep.subr.bf16.mxu0 0
  %530 = vmatpush1.bf16.msra.mxu0 0
  %531 = vmatprep.subr.bf16.mxu0 0
  %532 = vmatpush1.bf16.msra.mxu0 0
  %533 = vmatprep.subr.bf16.mxu0 0
  %534 = vmatpush1.bf16.msra.mxu0 %v517
  %535 = vmatprep.subr.bf16.mxu0 0
  %536 = vmatpush2.bf16.msra.mxu0 0
  %537 = vmatprep.subr.bf16.mxu0 0
  %538 = vmatpush2.bf16.msra.mxu0 0
  %539 = vmatprep.subr.bf16.mxu0 0
  %540 = vmatpush2.bf16.msra.mxu0 0
  %541 = vmatprep.subr.bf16.mxu0 0
  %542 = vmatpush2.bf16.msra.mxu0 0
  %543 = vmatprep.subr.bf16.mxu0 0
  %544 = vmatpush2.bf16.msra.mxu0 0
  %545 = vmatprep.subr.bf16.mxu0 0
  %546 = vmatpush2.bf16.msra.mxu0 0
  %547 = vmatprep.subr.bf16.mxu0 0
  %548 = vmatpush2.bf16.msra.mxu0 0
  %549 = vmatprep.subr.bf16.mxu0 0
  %550 = vmatpush2.bf16.msra.mxu0 0
  %551 = vmatprep.mubr.bf16.mxu0 0
  %552 = vmatmul.mubr.bf16.gmra.mxu0 %v252
  %v553 = vpop.f32.mrf.mxu0
  %v554 = vadd.f32 %v223, %v553
  %v555 = vpop.f32.mrf.mxu0
  %v556 = vpop.f32.mrf.mxu0
  %v557 = vadd.f32 %v228, %v556
  %v558 = vpop.f32.mrf.mxu0
  %559 = vmatprep.mubr.bf16.mxu0 0
  %560 = vmatmul.mubr.bf16.gmra.mxu0 %v255
  %v561 = vpop.f32.mrf.mxu0
  %v562 = vadd.f32 %v233, %v561
  %v563 = vpop.f32.mrf.mxu0
  %v564 = vpop.f32.mrf.mxu0
  %v565 = vadd.f32 %v238, %v564
  %v566 = vpop.f32.mrf.mxu0
  %567 = vdwg.mxu0
  %v568 = vmax.f32 %v554, 0.0
  %v569 = vmax.f32 %v557, 0.0
  %v570 = vmax.f32 %v562, 0.0
  %v571 = vmax.f32 %v565, 0.0
  %v572 = vmul.f32 %v568, %v32
  %v573 = vmul.f32 %v569, %v33
  %v574 = vmul.f32 %v570, %v34
  %v575 = vmul.f32 %v571, %v35
  %v576 = vpack.c.bf16 %v573, %v572
  %v577 = vpack.c.bf16 %v575, %v574
  %v579 = vsel %vm355, %v576, 0
  %v582 = vsel %vm355, %v577, 0
  %584 = vmatprep.subr.bf16.mxu0 0
  %585 = vmatpush1.bf16.msra.mxu0 0
  %586 = vmatprep.subr.bf16.mxu0 0
  %587 = vmatpush1.bf16.msra.mxu0 0
  %588 = vmatprep.subr.bf16.mxu0 0
  %589 = vmatpush1.bf16.msra.mxu0 0
  %590 = vmatprep.subr.bf16.mxu0 0
  %591 = vmatpush1.bf16.msra.mxu0 0
  %592 = vmatprep.subr.bf16.mxu0 %v367
  %593 = vmatpush1.bf16.msra.mxu0 %v364
  %594 = vmatprep.subr.bf16.mxu0 %v346
  %595 = vmatpush1.bf16.msra.mxu0 %v345
  %596 = vmatprep.subr.bf16.mxu0 %v344
  %597 = vmatpush1.bf16.msra.mxu0 %v343
  %598 = vmatprep.subr.bf16.mxu0 %v342
  %599 = vmatpush1.bf16.msra.mxu0 %v341
  %600 = vmatprep.subr.bf16.mxu0 0
  %601 = vmatpush2.bf16.msra.mxu0 0
  %602 = vmatprep.subr.bf16.mxu0 0
  %603 = vmatpush2.bf16.msra.mxu0 0
  %604 = vmatprep.subr.bf16.mxu0 0
  %605 = vmatpush2.bf16.msra.mxu0 0
  %606 = vmatprep.subr.bf16.mxu0 0
  %607 = vmatpush2.bf16.msra.mxu0 0
  %608 = vmatprep.subr.bf16.mxu0 0
  %609 = vmatpush2.bf16.msra.mxu0 0
  %610 = vmatprep.subr.bf16.mxu0 0
  %611 = vmatpush2.bf16.msra.mxu0 0
  %612 = vmatprep.subr.bf16.mxu0 0
  %613 = vmatpush2.bf16.msra.mxu0 0
  %614 = vmatprep.subr.bf16.mxu0 0
  %615 = vmatpush2.bf16.msra.mxu0 0
  %616 = vmatprep.mubr.bf16.mxu0 0
  %617 = vmatmul.mubr.bf16.gmra.mxu0 %v579
  %v618 = vpop.f32.mrf.mxu0
  %v619 = vadd.f32 0.0, %v618
  %v620 = vpop.f32.mrf.mxu0
  %v621 = vadd.f32 0.0, %v620
  %v622 = vpop.f32.mrf.mxu0
  %v623 = vadd.f32 0.0, %v622
  %v624 = vpop.f32.mrf.mxu0
  %v625 = vadd.f32 0.0, %v624
  %626 = vmatprep.mubr.bf16.mxu0 0
  %627 = vmatmul.mubr.bf16.gmra.mxu0 %v582
  %v628 = vpop.f32.mrf.mxu0
  %v629 = vadd.f32 0.0, %v628
  %v630 = vpop.f32.mrf.mxu0
  %v631 = vadd.f32 0.0, %v630
  %v632 = vpop.f32.mrf.mxu0
  %v633 = vadd.f32 0.0, %v632
  %v634 = vpop.f32.mrf.mxu0
  %v635 = vadd.f32 0.0, %v634
  %636 = vdwg.mxu0
  %v645 = vrot.slane %v619, 4
  %v646 = vrot.slane %v621, 4
  %v647 = vrot.slane %v623, 4
  %v648 = vsel %vm430, %v645, %v647
  %v649 = vrot.slane %v625, 4
  %v650 = vsel %vm430, %v646, %v649
  %v651 = vrot.slane %v629, 4
  %v652 = vsel %vm430, %v647, %v651
  %v653 = vrot.slane %v631, 4
  %v654 = vsel %vm430, %v649, %v653
  %v655 = vrot.slane %v633, 4
  %v656 = vsel %vm430, %v651, %v655
  %v657 = vrot.slane %v635, 4
  %v658 = vsel %vm430, %v653, %v657
  %669 = vst [vmem:[%s470] sm:$0xf0] %v645
  %670 = vst [vmem:[%s470 + $0x8] sm:$0xf0] %v646
  %671 = vst [vmem:[%s470 + $0x10] sm:$0xff] %v648
  %672 = vst [vmem:[%s470 + $0x18] sm:$0xff] %v650
  %673 = vst [vmem:[%s470 + $0x20] sm:$0xff] %v652
  %674 = vst [vmem:[%s470 + $0x28] sm:$0xff] %v654
  %675 = vst [vmem:[%s470 + $0x30] sm:$0xff] %v656
  %676 = vst [vmem:[%s470 + $0x38] sm:$0xff] %v658
  %677 = vst [vmem:[%s470 + $0x40] sm:$0xf] %v655
  %678 = vst [vmem:[%s470 + $0x48] sm:$0xf] %v657
  // Predicated region
  $region26: #{psp_forward.1} parent=0 // pred_check
    _
  $region27: #{psp_forward.1} parent=0 // pred_check_branch
    %680 = sbr.rel (0) target = $region29
  $region28: #{psp_forward.1} parent=0 // pred_region
    _
  $region29: #{psp_forward.1} parent=0 // pred_fallthru
    _
  // Predicated region
  $region30: #{psp_forward.1} parent=0 // pred_check
    _
  $region31: #{psp_forward.1} parent=0 // pred_check_branch
    %682 = sbr.rel (0) target = $region33
  $region32: #{psp_forward.1} parent=0 // pred_region
    _
  $region33: #{psp_forward.1} parent=0 // pred_fallthru
    _

</llo_original>
